<compile_context>
chip_gen: v7x
topology: tpu7x:2x2x1
jax: 0.10.0
libtpu: 0.0.40
codegen_flags: <defaults>
</compile_context>

<pallas_src>
import jax
import jax.numpy as jnp
from jax import lax
from jax.experimental import pallas as pl
from jax.experimental.pallas import tpu as pltpu


_SEQ_TILE_TARGET = 1024  # output columns per grid step; 512-2048 ~ HBM roofline per measured data


def _vmem_budget_bytes():
    """Generation-aware VMEM budget (v7x: ~54 MiB, v5e/v6e: ~108 MiB)."""
    try:
        cap = pltpu.get_tpu_info().vmem_capacity_bytes
        return int(cap * 0.85)
    except Exception:
        return 48 * 1024 * 1024  # conservative: fits every generation


def _downsample1d_kernel(a_ref, b_ref, a2_ref, w_ref, bias_ref, o_ref):
    # a/b/a2_ref: (C, TL) activation tiles (channels on sublanes, sequence on lanes)
    # w_ref     : (3, Cout, Cin) conv taps     bias_ref: (Cout, 1)     o_ref: (Cout, TL)
    acc = jnp.dot(w_ref[0], a_ref[...], preferred_element_type=jnp.float32)
    acc = acc + jnp.dot(w_ref[1], b_ref[...], preferred_element_type=jnp.float32)
    acc = acc + jnp.dot(w_ref[2], a2_ref[...], preferred_element_type=jnp.float32)
    o_ref[...] = (acc + bias_ref[...]).astype(o_ref.dtype)


def downsample1d(x_ncl, weight, bias):
    """Conv1d(dim, dim, 3, stride=2, padding=1) forward.

    x_ncl  : (N, C, L)           (PyTorch NCL layout; f32 or bf16)
    weight : (C_out, C_in, 3)    (PyTorch Conv1d weight layout)
    bias   : (C_out,)
    returns: (N, C_out, L_out) with L_out = (L - 1) // 2 + 1, dtype of x_ncl.
    """
    N, C, L = x_ncl.shape
    Cout = weight.shape[0]
    L_out = (L - 1) // 2 + 1
    dt = x_ncl.dtype
    isz = jnp.dtype(dt).itemsize

    # ---- operand prep: one fused strided-slice/pad pass, no transposes, no channel pad ----
    odd = x_ncl[:, :, 1::2]                                         # x[..., 1], x[..., 3], ...
    zcol = jnp.zeros((N, C, 1), dt)
    A = jnp.concatenate([zcol, odd], axis=-1)[:, :, :L_out]         # A [m] = x_pad[2m]   = x[2m-1]
    B = x_ncl[:, :, ::2]                                            # B [m] = x_pad[2m+1] = x[2m]
    if odd.shape[-1] < L_out:                                       # (odd L) right zero pad
        A2 = jnp.concatenate([odd, zcol], axis=-1)[:, :, :L_out]    # A2[m] = x_pad[2m+2] = x[2m+1]
    else:
        A2 = odd[:, :, :L_out]
    W3 = jnp.moveaxis(weight, 2, 0).astype(dt)                      # (3, Cout, Cin)
    b2 = bias.astype(jnp.float32).reshape(Cout, 1)                  # broadcasts over lanes

    # ---- sequence tile size from the generation-aware VMEM budget ----
    budget = _vmem_budget_bytes()

    def vmem_need(tl):
        blk_in = 3 * C * tl * isz                 # A, B, A2 tiles
        blk_out = Cout * tl * isz
        acc_tmp = 2 * Cout * tl * 4               # f32 accumulator + fusion-temp slack
        w_bytes = 2 * (3 * Cout * C * isz + Cout * 4)   # weights/bias, default double-buffered
        return 2 * (blk_in + blk_out) + acc_tmp + w_bytes + (2 << 20)

    TL = min(L_out, _SEQ_TILE_TARGET)
    if (TL < L_out or vmem_need(TL) > budget) and L_out > 128:
        TL = (min(L_out, _SEQ_TILE_TARGET) // 128) * 128            # tiles must be lane multiples
        while TL > 128 and vmem_need(TL) > budget:
            TL -= 128
    n_t = pl.cdiv(L_out, TL)
    vmem_limit = int(min(max(32 * 1024 * 1024, vmem_need(TL)), budget))

    out = pl.pallas_call(
        _downsample1d_kernel,
        out_shape=jax.ShapeDtypeStruct((N, Cout, L_out), dt),
        grid_spec=pltpu.PrefetchScalarGridSpec(
            num_scalar_prefetch=0,
            grid=(N, n_t),
            in_specs=[
                pl.BlockSpec((None, C, TL), lambda n, t: (n, 0, t)),
                pl.BlockSpec((None, C, TL), lambda n, t: (n, 0, t)),
                pl.BlockSpec((None, C, TL), lambda n, t: (n, 0, t)),
                pl.BlockSpec((3, Cout, C), lambda n, t: (0, 0, 0)),
                pl.BlockSpec((Cout, 1), lambda n, t: (0, 0)),
            ],
            out_specs=pl.BlockSpec((None, Cout, TL), lambda n, t: (n, 0, t)),
        ),
        compiler_params=pltpu.CompilerParams(
            dimension_semantics=("parallel", "parallel"),
            vmem_limit_bytes=vmem_limit,
        ),
    )(A, B, A2, W3, b2)
    return out


def downsample1d_reference(x_ncl, weight, bias):
    """Pure-JAX reference (strided conv, pad 1)."""
    y = lax.conv_general_dilated(
        x_ncl, weight,
        window_strides=(2,),
        padding=[(1, 1)],
        dimension_numbers=("NCH", "OIH", "NCH"),
    )
    return y + bias[None, :, None]


if __name__ == "__main__":
    dim, N, L = 8, 2, 16

    key = jax.random.PRNGKey(0)
    kx, kw, kb = jax.random.split(key, 3)
    x = jax.random.normal(kx, (N, dim, L), dtype=jnp.float32)           # NCL, like PyTorch
    bound = 1.0 / (dim * 3) ** 0.5
    weight = jax.random.uniform(kw, (dim, dim, 3), jnp.float32, -bound, bound)
    bias = jax.random.uniform(kb, (dim,), jnp.float32, -bound, bound)

    L_out = (L - 1) // 2 + 1

    # f32, even length
    y = jax.block_until_ready(downsample1d(x, weight, bias))
    y_ref = downsample1d_reference(x, weight, bias)
    assert y.shape == (N, dim, L_out), y.shape
    assert jnp.allclose(y, y_ref, atol=1e-5, rtol=1e-5), float(jnp.max(jnp.abs(y - y_ref)))

    # f32, odd length (exercises the right-pad path)
    x_odd = jax.random.normal(kb, (N, dim, L - 1), dtype=jnp.float32)
    y2 = jax.block_until_ready(downsample1d(x_odd, weight, bias))
    y2_ref = downsample1d_reference(x_odd, weight, bias)
    assert y2.shape == y2_ref.shape, y2.shape
    assert jnp.allclose(y2, y2_ref, atol=1e-5, rtol=1e-5), float(jnp.max(jnp.abs(y2 - y2_ref)))

    # bf16 activations/weights (halved HBM traffic), f32 accumulation — loose tolerance
    yb = jax.block_until_ready(
        downsample1d(x.astype(jnp.bfloat16), weight.astype(jnp.bfloat16), bias))
    assert jnp.allclose(yb.astype(jnp.float32), y_ref, atol=1e-1, rtol=1e-1), \
        float(jnp.max(jnp.abs(yb.astype(jnp.float32) - y_ref)))

    print("KERNEL_OK")
</pallas_src>

<mosaic_0001>
module attributes {stable_mosaic.version = 11 : i64} {
  func.func @_downsample1d_kernel(%arg0: i32, %arg1: i32, %arg2: memref<1x8x8xf32, #tpu.memory_space<vmem>>, %arg3: memref<1x8x8xf32, #tpu.memory_space<vmem>>, %arg4: memref<1x8x8xf32, #tpu.memory_space<vmem>>, %arg5: memref<3x8x8xf32, #tpu.memory_space<vmem>>, %arg6: memref<8x1xf32, #tpu.memory_space<vmem>>, %arg7: memref<1x8x8xf32, #tpu.memory_space<vmem>>) attributes {dimension_semantics = [#tpu.dimension_semantics<parallel>, #tpu.dimension_semantics<parallel>], iteration_bounds = array<i64: 2, 1>, scalar_prefetch = 0 : i64, scratch_operands = 0 : i64, tpu.core_type = #tpu.core_type<tc>, window_params = [{transform_indices = @transform_0, window_bounds = array<i64: 1, 8, 8>}, {transform_indices = @transform_1, window_bounds = array<i64: 1, 8, 8>}, {transform_indices = @transform_2, window_bounds = array<i64: 1, 8, 8>}, {pipeline_mode = #tpu.pipeline_mode<synchronous>, transform_indices = @transform_3, window_bounds = array<i64: 3, 8, 8>}, {pipeline_mode = #tpu.pipeline_mode<synchronous>, transform_indices = @transform_4, window_bounds = array<i64: 8, 1>}, {transform_indices = @transform_5, window_bounds = array<i64: 1, 8, 8>}]} {
    %c0 = arith.constant 0 : index
    %c0_0 = arith.constant 0 : index
    %c0_1 = arith.constant 0 : index
    %0 = vector.load %arg5[%c0, %c0_0, %c0_1] : memref<3x8x8xf32, #tpu.memory_space<vmem>>, vector<1x8x8xf32>
    %1 = vector.shape_cast %0 : vector<1x8x8xf32> to vector<8x8xf32>
    %c0_2 = arith.constant 0 : index
    %c0_3 = arith.constant 0 : index
    %c0_4 = arith.constant 0 : index
    %2 = vector.load %arg2[%c0_2, %c0_3, %c0_4] : memref<1x8x8xf32, #tpu.memory_space<vmem>>, vector<1x8x8xf32>
    %3 = vector.shape_cast %2 : vector<1x8x8xf32> to vector<8x8xf32>
    %cst = arith.constant dense<0.000000e+00> : vector<8x8xf32>
    %4 = tpu.matmul %1, %3, %cst {dimension_numbers = #tpu.dot_dimension_numbers<[1], [0], [0], [1], [0, 0, 1, 1], [], []>} : vector<8x8xf32>, vector<8x8xf32>, vector<8x8xf32> -> vector<8x8xf32>
    %c1 = arith.constant 1 : index
    %c0_5 = arith.constant 0 : index
    %c0_6 = arith.constant 0 : index
    %5 = vector.load %arg5[%c1, %c0_5, %c0_6] : memref<3x8x8xf32, #tpu.memory_space<vmem>>, vector<1x8x8xf32>
    %6 = vector.shape_cast %5 : vector<1x8x8xf32> to vector<8x8xf32>
    %c0_7 = arith.constant 0 : index
    %c0_8 = arith.constant 0 : index
    %c0_9 = arith.constant 0 : index
    %7 = vector.load %arg3[%c0_7, %c0_8, %c0_9] : memref<1x8x8xf32, #tpu.memory_space<vmem>>, vector<1x8x8xf32>
    %8 = vector.shape_cast %7 : vector<1x8x8xf32> to vector<8x8xf32>
    %cst_10 = arith.constant dense<0.000000e+00> : vector<8x8xf32>
    %9 = tpu.matmul %6, %8, %cst_10 {dimension_numbers = #tpu.dot_dimension_numbers<[1], [0], [0], [1], [0, 0, 1, 1], [], []>} : vector<8x8xf32>, vector<8x8xf32>, vector<8x8xf32> -> vector<8x8xf32>
    %10 = arith.addf %4, %9 : vector<8x8xf32>
    %c2 = arith.constant 2 : index
    %c0_11 = arith.constant 0 : index
    %c0_12 = arith.constant 0 : index
    %11 = vector.load %arg5[%c2, %c0_11, %c0_12] : memref<3x8x8xf32, #tpu.memory_space<vmem>>, vector<1x8x8xf32>
    %12 = vector.shape_cast %11 : vector<1x8x8xf32> to vector<8x8xf32>
    %c0_13 = arith.constant 0 : index
    %c0_14 = arith.constant 0 : index
    %c0_15 = arith.constant 0 : index
    %13 = vector.load %arg4[%c0_13, %c0_14, %c0_15] : memref<1x8x8xf32, #tpu.memory_space<vmem>>, vector<1x8x8xf32>
    %14 = vector.shape_cast %13 : vector<1x8x8xf32> to vector<8x8xf32>
    %cst_16 = arith.constant dense<0.000000e+00> : vector<8x8xf32>
    %15 = tpu.matmul %12, %14, %cst_16 {dimension_numbers = #tpu.dot_dimension_numbers<[1], [0], [0], [1], [0, 0, 1, 1], [], []>} : vector<8x8xf32>, vector<8x8xf32>, vector<8x8xf32> -> vector<8x8xf32>
    %16 = arith.addf %10, %15 : vector<8x8xf32>
    %c0_17 = arith.constant 0 : index
    %c0_18 = arith.constant 0 : index
    %17 = vector.load %arg6[%c0_17, %c0_18] : memref<8x1xf32, #tpu.memory_space<vmem>>, vector<8x1xf32>
    %18 = vector.broadcast %17 : vector<8x1xf32> to vector<8x8xf32>
    %19 = arith.addf %16, %18 : vector<8x8xf32>
    %c0_19 = arith.constant 0 : index
    %c0_20 = arith.constant 0 : index
    %c0_21 = arith.constant 0 : index
    %20 = vector.load %arg7[%c0_19, %c0_20, %c0_21] : memref<1x8x8xf32, #tpu.memory_space<vmem>>, vector<1x8x8xf32>
    %21 = vector.shape_cast %20 : vector<1x8x8xf32> to vector<8x8xf32>
    %22 = vector.shape_cast %19 : vector<8x8xf32> to vector<1x8x8xf32>
    tpu.vector_store %arg7[%c0_19, %c0_20, %c0_21], %22 {strides = array<i32>} : memref<1x8x8xf32, #tpu.memory_space<vmem>>, vector<1x8x8xf32>,
    return
  }
  func.func @transform_0(%arg0: i32, %arg1: i32) -> (i32, i32, i32) {
    %c0_i32 = arith.constant 0 : i32
    %c0_i32_0 = arith.constant 0 : i32
    return %arg0, %c0_i32, %arg1 : i32, i32, i32
  }
  func.func @transform_1(%arg0: i32, %arg1: i32) -> (i32, i32, i32) {
    %c0_i32 = arith.constant 0 : i32
    %c0_i32_0 = arith.constant 0 : i32
    return %arg0, %c0_i32, %arg1 : i32, i32, i32
  }
  func.func @transform_2(%arg0: i32, %arg1: i32) -> (i32, i32, i32) {
    %c0_i32 = arith.constant 0 : i32
    %c0_i32_0 = arith.constant 0 : i32
    return %arg0, %c0_i32, %arg1 : i32, i32, i32
  }
  func.func @transform_3(%arg0: i32, %arg1: i32) -> (i32, i32, i32) {
    %c0_i32 = arith.constant 0 : i32
    %c0_i32_0 = arith.constant 0 : i32
    %c0_i32_1 = arith.constant 0 : i32
    %c0_i32_2 = arith.constant 0 : i32
    return %c0_i32, %c0_i32_0, %c0_i32_1 : i32, i32, i32
  }
  func.func @transform_4(%arg0: i32, %arg1: i32) -> (i32, i32) {
    %c0_i32 = arith.constant 0 : i32
    %c0_i32_0 = arith.constant 0 : i32
    %c0_i32_1 = arith.constant 0 : i32
    return %c0_i32, %c0_i32_0 : i32, i32
  }
  func.func @transform_5(%arg0: i32, %arg1: i32) -> (i32, i32, i32) {
    %c0_i32 = arith.constant 0 : i32
    %c0_i32_0 = arith.constant 0 : i32
    return %arg0, %c0_i32, %arg1 : i32, i32, i32
  }
}

</mosaic_0001>

<llo_original>
// kernel: tpu_custom_call.1
$region0: #{tpu_custom_call.1}
  #allocation0 [shape = 'u32[]', space=smem, size = 0x4, offset = 0x4, fixed_abs, tag = 'smem constant byte address 0x4 - core index']
  #allocation1 [shape = 'u32[144,128]{1,0:T(1,128)}', space=vmem, size = 0x12000, scoped, tag = 'internal scratch']
  %s0 = inlined_call_operand.hbm [shape: f32[2,8,8], index: 0, kind: input, shape index: {}]
  %s1 = inlined_call_operand.hbm [shape: f32[2,8,8], index: 1, kind: input, shape index: {}]
  %s2 = inlined_call_operand.vmem [shape: f32[2,8,8], index: 2, kind: input, shape index: {}]
  %s3 = inlined_call_operand.hbm [shape: f32[3,8,8], index: 3, kind: input, shape index: {}]
  %s4 = inlined_call_operand.vmem [shape: f32[8,1], index: 4, kind: input, shape index: {}]
  %s5 = inlined_call_operand.hbm [shape: f32[2,8,8], index: 5, kind: output, shape index: {}]
  %s6 = sld [smem:[#allocation0]]
  $region65: #{tpu_custom_call.1} parent=0
    _
  %s8 = ssub.s32 1, %s6
  %s9 = scalar_select 0, %s8, %s6
  $region1: #{tpu_custom_call.1} parent=0
    #allocation2 [shape = 'u8[8192]{0}', space=vmem, size = 0x2000, scoped, tag = 'input window, operand 0']
    #allocation3 [shape = 's32[2]{0}', space=sflag, size = 0x8, scoped, tag = 'scoped memory for tpu_custom_call.1']
    #allocation4 [shape = 's32[2]{0}', space=sflag, size = 0x8, scoped, tag = 'scoped memory for tpu_custom_call.1']
    #allocation5 [shape = 'u8[8192]{0}', space=vmem, size = 0x2000, scoped, tag = 'input window, operand 1']
    #allocation6 [shape = 's32[2]{0}', space=sflag, size = 0x8, scoped, tag = 'scoped memory for tpu_custom_call.1']
    #allocation7 [shape = 'u8[12288]{0}', space=vmem, size = 0x3000, scoped, tag = 'input window, operand 3, single buffered']
    #allocation8 [shape = 'u8[8192]{0}', space=vmem, size = 0x2000, scoped, tag = 'output window, operand 0']
    %10 = vsyncpa [#allocation3], 0
    %s11 = scalar_lea.sflag [#allocation3], 1
    %12 = vsyncpa %s11, 0
    %13 = vsyncpa [#allocation6], 0
    %s14 = scalar_lea.sflag [#allocation6], 1
    %15 = vsyncpa %s14, 0
    %16 = vsyncpa [#allocation4], 0
    %s17 = scalar_lea.sflag [#allocation4], 1
    %18 = vsyncpa %s17, 0
    loop: start=0, step=1, limit=4
    $region2: #{tpu_custom_call.1} parent=1 // loop_pre_header
      _
    $region3: #{tpu_custom_call.1} parent=1 // loop_header
      %s20 = sphi 0, %s24
      %p21 = scmp.ge.s32.totalorder %s20, 4
      %s27 = sphi 0, %s39
      %s28 = sphi 0, %s35
      %s29 = sphi 0, %s27
      %s30 = sphi 0, %s28
      %s31 = sphi 0, %s29
      %s32 = sphi 0, %s30
      %s44 = sphi 0, %s46
      %s47 = sphi 0, %s44
      %s48 = sphi 0, %s47
      %s64 = sphi 0, %s48
      %s72 = sphi 0, %s74
      %s75 = sphi 0, %s72
      %s76 = sphi 0, %s75
      %s92 = sphi 0, %s76
      %s100 = sphi 0, %s102
      %s103 = sphi 0, %s100
      %s104 = sphi 0, %s103
      %s120 = sphi 0, %s104
      %s124 = sphi 0, %s124
      %s126 = sphi 0, %s124
      %s127 = sphi 0, %s126
      %s141 = sphi 0, %s127
      %s145 = sphi 0, %s145
      %s147 = sphi 0, %s145
      %s148 = sphi 0, %s147
      %s162 = sphi 0, %s148
      %s170 = sphi 0, %s172
      %s173 = sphi 0, %s170
      %s174 = sphi 0, %s173
      %s190 = sphi 0, %s174
    $region4: #{tpu_custom_call.1} parent=1 // loop_header_branch
      %23 = sbr.rel (%p21) target = $region8
    $region5: #{tpu_custom_call.1} parent=1 // loop_body
      %s25 = ssub.s32 %s20, 1
      %s26 = ssub.s32 %s20, 2
      %s33 = sadd.s32 1, %s28
      %p34 = scmp.ge.s32.totalorder %s33, 1
      %s35 = scalar_select %p34, 0, %s33
      %s36 = sadd.s32 1, %s27
      %s37 = scalar_select %p34, %s36, %s27
      %p38 = scmp.ge.s32.totalorder %s37, 2
      %s39 = scalar_select %p38, 0, %s37
      %s40 = ssub.s32 %s27, %s39
      %s41 = ssub.s32 %s28, %s35
      %s42 = sor.u32 %s40, %s41
      %p43 = scmp.eq.s32.totalorder %s42, 0
      %s45 = sadd.s32 %s44, 1
      %s46 = scalar_select %p43, %s44, %s45
      %p49 = pneg %p43
      %p50 = scmp.eq.s32.totalorder %s20, 1
      %p51 = por %p49, %p50
      %p52 = scmp.ne.s32.totalorder %s44, %s47
      %p53 = scmp.eq.s32.totalorder %s20, 0
      %p54 = por %p52, %p53
      %p55 = scmp.ne.s32.totalorder %s44, %s47
      %p56 = scmp.eq.s32.totalorder %s25, 1
      %p57 = por %p55, %p56
      %p58 = scmp.ne.s32.totalorder %s47, %s48
      %p59 = scmp.eq.s32.totalorder %s25, 0
      %p60 = por %p58, %p59
      %p61 = scmp.ne.s32.totalorder %s47, %s48
      %p62 = scmp.eq.s32.totalorder %s26, 1
      %p63 = por %p61, %p62
      %p65 = scmp.ne.s32.totalorder %s48, %s64
      %p66 = scmp.eq.s32.totalorder %s26, 0
      %p67 = por %p65, %p66
      %s68 = ssub.s32 %s27, %s39
      %s69 = ssub.s32 %s28, %s35
      %s70 = sor.u32 %s68, %s69
      %p71 = scmp.eq.s32.totalorder %s70, 0
      %s73 = sadd.s32 %s72, 1
      %s74 = scalar_select %p71, %s72, %s73
      %p77 = pneg %p71
      %p78 = scmp.eq.s32.totalorder %s20, 1
      %p79 = por %p77, %p78
      %p80 = scmp.ne.s32.totalorder %s72, %s75
      %p81 = scmp.eq.s32.totalorder %s20, 0
      %p82 = por %p80, %p81
      %p83 = scmp.ne.s32.totalorder %s72, %s75
      %p84 = scmp.eq.s32.totalorder %s25, 1
      %p85 = por %p83, %p84
      %p86 = scmp.ne.s32.totalorder %s75, %s76
      %p87 = scmp.eq.s32.totalorder %s25, 0
      %p88 = por %p86, %p87
      %p89 = scmp.ne.s32.totalorder %s75, %s76
      %p90 = scmp.eq.s32.totalorder %s26, 1
      %p91 = por %p89, %p90
      %p93 = scmp.ne.s32.totalorder %s76, %s92
      %p94 = scmp.eq.s32.totalorder %s26, 0
      %p95 = por %p93, %p94
      %s96 = ssub.s32 %s27, %s39
      %s97 = ssub.s32 %s28, %s35
      %s98 = sor.u32 %s96, %s97
      %p99 = scmp.eq.s32.totalorder %s98, 0
      %s101 = sadd.s32 %s100, 1
      %s102 = scalar_select %p99, %s100, %s101
      %p105 = pneg %p99
      %p106 = scmp.eq.s32.totalorder %s20, 1
      %p107 = por %p105, %p106
      %p108 = scmp.ne.s32.totalorder %s100, %s103
      %p109 = scmp.eq.s32.totalorder %s20, 0
      %p110 = por %p108, %p109
      %p111 = scmp.ne.s32.totalorder %s100, %s103
      %p112 = scmp.eq.s32.totalorder %s25, 1
      %p113 = por %p111, %p112
      %p114 = scmp.ne.s32.totalorder %s103, %s104
      %p115 = scmp.eq.s32.totalorder %s25, 0
      %p116 = por %p114, %p115
      %p117 = scmp.ne.s32.totalorder %s103, %s104
      %p118 = scmp.eq.s32.totalorder %s26, 1
      %p119 = por %p117, %p118
      %p121 = scmp.ne.s32.totalorder %s104, %s120
      %p122 = scmp.eq.s32.totalorder %s26, 0
      %p123 = por %p121, %p122
      %s125 = sadd.s32 %s124, 1
      %p128 = scmp.eq.s32.totalorder %s20, 1
      %p129 = scmp.ne.s32.totalorder %s124, %s126
      %p130 = scmp.eq.s32.totalorder %s20, 0
      %p131 = por %p129, %p130
      %p132 = scmp.ne.s32.totalorder %s124, %s126
      %p133 = scmp.eq.s32.totalorder %s25, 1
      %p134 = por %p132, %p133
      %p135 = scmp.ne.s32.totalorder %s126, %s127
      %p136 = scmp.eq.s32.totalorder %s25, 0
      %p137 = por %p135, %p136
      %p138 = scmp.ne.s32.totalorder %s126, %s127
      %p139 = scmp.eq.s32.totalorder %s26, 1
      %p140 = por %p138, %p139
      %p142 = scmp.ne.s32.totalorder %s127, %s141
      %p143 = scmp.eq.s32.totalorder %s26, 0
      %p144 = por %p142, %p143
      %s146 = sadd.s32 %s145, 1
      %p149 = scmp.eq.s32.totalorder %s20, 1
      %p150 = scmp.ne.s32.totalorder %s145, %s147
      %p151 = scmp.eq.s32.totalorder %s20, 0
      %p152 = por %p150, %p151
      %p153 = scmp.ne.s32.totalorder %s145, %s147
      %p154 = scmp.eq.s32.totalorder %s25, 1
      %p155 = por %p153, %p154
      %p156 = scmp.ne.s32.totalorder %s147, %s148
      %p157 = scmp.eq.s32.totalorder %s25, 0
      %p158 = por %p156, %p157
      %p159 = scmp.ne.s32.totalorder %s147, %s148
      %p160 = scmp.eq.s32.totalorder %s26, 1
      %p161 = por %p159, %p160
      %p163 = scmp.ne.s32.totalorder %s148, %s162
      %p164 = scmp.eq.s32.totalorder %s26, 0
      %p165 = por %p163, %p164
      %s166 = ssub.s32 %s27, %s39
      %s167 = ssub.s32 %s28, %s35
      %s168 = sor.u32 %s166, %s167
      %p169 = scmp.eq.s32.totalorder %s168, 0
      %s171 = sadd.s32 %s170, 1
      %s172 = scalar_select %p169, %s170, %s171
      %p175 = pneg %p169
      %p176 = scmp.eq.s32.totalorder %s20, 1
      %p177 = por %p175, %p176
      %p178 = scmp.ne.s32.totalorder %s170, %s173
      %p179 = scmp.eq.s32.totalorder %s20, 0
      %p180 = por %p178, %p179
      %p181 = scmp.ne.s32.totalorder %s170, %s173
      %p182 = scmp.eq.s32.totalorder %s25, 1
      %p183 = por %p181, %p182
      %p184 = scmp.ne.s32.totalorder %s173, %s174
      %p185 = scmp.eq.s32.totalorder %s25, 0
      %p186 = por %p184, %p185
      %p187 = scmp.ne.s32.totalorder %s173, %s174
      %p188 = scmp.eq.s32.totalorder %s26, 1
      %p189 = por %p187, %p188
      %p191 = scmp.ne.s32.totalorder %s174, %s190
      %p192 = scmp.eq.s32.totalorder %s26, 0
      %p193 = por %p191, %p192
      %p194 = scmp.le.s32.totalorder 1, %s20
      %p195 = scmp.lt.s32.totalorder %s20, 3
      %p196 = pnand %p194, %p195
      %p197 = pneg %p196
      // Predicated region
      $region9: #{tpu_custom_call.1} parent=5 // pred_check
        _
      $region10: #{tpu_custom_call.1} parent=5 // pred_check_branch
        %199 = sbr.rel (%p196) target = $region12
      $region11: #{tpu_custom_call.1} parent=5 // pred_region
        %s200 = ssub.s32 %s20, 1
        // Predicated region
        $region13: #{tpu_custom_call.1} parent=11 // pred_check
          %p201 = pneg %p137
        $region14: #{tpu_custom_call.1} parent=11 // pred_check_branch
          %203 = sbr.rel (%p201) target = $region16
        $region15: #{tpu_custom_call.1} parent=11 // pred_region
          %s205 = ssub.s32 384, 384
          %206 = vsyncadd [#allocation6], %s205
          %s207 = sshll.u32 [#allocation7], 4
          %s208 = int_to_ptr.vmem [resolvable:$true] %s207
          %213 = dma.hbm_to_vmem [thread:$0]  %s3, 384, %s208, [#allocation6], 128, 128, 8
        $region16: #{tpu_custom_call.1} parent=11 // pred_fallthru
          _
        // Predicated region
        $region17: #{tpu_custom_call.1} parent=11 // pred_check
          %p214 = pneg %p158
        $region18: #{tpu_custom_call.1} parent=11 // pred_check_branch
          %216 = sbr.rel (%p214) target = $region20
        $region19: #{tpu_custom_call.1} parent=11 // pred_region
          _
        $region20: #{tpu_custom_call.1} parent=11 // pred_fallthru
          _
      $region12: #{tpu_custom_call.1} parent=5 // pred_fallthru
        _
      %p217 = scmp.lt.s32.totalorder %s20, 2
      // Predicated region
      $region21: #{tpu_custom_call.1} parent=5 // pred_check
        %p218 = pneg %p217
      $region22: #{tpu_custom_call.1} parent=5 // pred_check_branch
        %220 = sbr.rel (%p218) target = $region24
      $region23: #{tpu_custom_call.1} parent=5 // pred_region
        // Predicated region
        $region25: #{tpu_custom_call.1} parent=23 // pred_check
          %p221 = pneg %p54
        $region26: #{tpu_custom_call.1} parent=23 // pred_check_branch
          %223 = sbr.rel (%p221) target = $region28
        $region27: #{tpu_custom_call.1} parent=23 // pred_region
          %s224 = sand.u32 %s44, 1
          %s225 = scalar_lea.sflag [#allocation3], %s224
          %s226 = sand.u32 %s44, 1
          %s227 = smul.addr %s226, 8
          %s228 = scalar_lea.vmem [#allocation2], %s227
          %s230 = ssub.s32 128, 128
          %231 = vsyncadd %s225, %s230
          %s232 = sadd.s32 %s28, %s27
          %s233 = smul.addr %s232, 128
          %s234 = scalar_lea.hbm %s0, %s233
          %s236 = sshll.u32 %s228, 4
          %s237 = int_to_ptr.vmem [resolvable:$true] %s236
          %239 = dma.hbm_to_vmem [thread:$0]  %s234, 128, %s237, %s225
        $region28: #{tpu_custom_call.1} parent=23 // pred_fallthru
          _
        // Predicated region
        $region29: #{tpu_custom_call.1} parent=23 // pred_check
          %p240 = pneg %p82
        $region30: #{tpu_custom_call.1} parent=23 // pred_check_branch
          %242 = sbr.rel (%p240) target = $region32
        $region31: #{tpu_custom_call.1} parent=23 // pred_region
          %s243 = sand.u32 %s20, 1
          %s244 = scalar_lea.sflag [#allocation6], %s243
          %s245 = sand.u32 %s72, 1
          %s246 = smul.addr %s245, 8
          %s247 = scalar_lea.vmem [#allocation5], %s246
          %s249 = ssub.s32 128, 128
          %250 = vsyncadd %s244, %s249
          %s251 = sadd.s32 %s28, %s27
          %s252 = smul.addr %s251, 128
          %s253 = scalar_lea.hbm %s1, %s252
          %s255 = sshll.u32 %s247, 4
          %s256 = int_to_ptr.vmem [resolvable:$true] %s255
          %258 = dma.hbm_to_vmem [thread:$0]  %s253, 128, %s256, %s244
        $region32: #{tpu_custom_call.1} parent=23 // pred_fallthru
          _
        // Predicated region
        $region33: #{tpu_custom_call.1} parent=23 // pred_check
          %p259 = pneg %p110
        $region34: #{tpu_custom_call.1} parent=23 // pred_check_branch
          %261 = sbr.rel (%p259) target = $region36
        $region35: #{tpu_custom_call.1} parent=23 // pred_region
          %p262 = scmp.lt.s32.totalorder %s27, 1
          %s263 = scalar_select %p262, %s27, 1
          %p264 = scmp.lt.s32.totalorder %s28, 0
          %s265 = scalar_select %p264, %s28, 0
          %s266 = sadd.s32 %s265, %s263
          %s267 = smul.addr %s266, 8
          %s268 = scalar_lea.vmem %s2, %s267
        $region36: #{tpu_custom_call.1} parent=23 // pred_fallthru
          _
      $region24: #{tpu_custom_call.1} parent=5 // pred_fallthru
        _
      %p269 = scmp.le.s32.totalorder 1, %s20
      %p270 = scmp.lt.s32.totalorder %s20, 3
      %p271 = pnand %p269, %p270
      %p272 = pneg %p271
      // Predicated region
      $region37: #{tpu_custom_call.1} parent=5 // pred_check
        _
      $region38: #{tpu_custom_call.1} parent=5 // pred_check_branch
        %274 = sbr.rel (%p271) target = $region40
      $region39: #{tpu_custom_call.1} parent=5 // pred_region
        %s275 = ssub.s32 %s20, 1
        %s276 = sand.u32 %s47, 1
        %s277 = scalar_lea.sflag [#allocation3], %s276
        %s278 = sand.u32 %s47, 1
        %s279 = smul.addr %s278, 8
        %s280 = scalar_lea.vmem [#allocation2], %s279
        // Predicated region
        $region41: #{tpu_custom_call.1} parent=39 // pred_check
          %p281 = pneg %p60
        $region42: #{tpu_custom_call.1} parent=39 // pred_check_branch
          %283 = sbr.rel (%p281) target = $region44
        $region43: #{tpu_custom_call.1} parent=39 // pred_region
          %284 = dma.done %s277, 128
        $region44: #{tpu_custom_call.1} parent=39 // pred_fallthru
          _
        %s285 = sand.u32 %s25, 1
        %s286 = scalar_lea.sflag [#allocation6], %s285
        %s287 = sand.u32 %s75, 1
        %s288 = smul.addr %s287, 8
        %s289 = scalar_lea.vmem [#allocation5], %s288
        // Predicated region
        $region45: #{tpu_custom_call.1} parent=39 // pred_check
          %p290 = pneg %p88
        $region46: #{tpu_custom_call.1} parent=39 // pred_check_branch
          %292 = sbr.rel (%p290) target = $region48
        $region47: #{tpu_custom_call.1} parent=39 // pred_region
          %293 = dma.done %s286, 128
        $region48: #{tpu_custom_call.1} parent=39 // pred_fallthru
          _
        // Predicated region
        $region49: #{tpu_custom_call.1} parent=39 // pred_check
          %p294 = pneg %p137
        $region50: #{tpu_custom_call.1} parent=39 // pred_check_branch
          %296 = sbr.rel (%p294) target = $region52
        $region51: #{tpu_custom_call.1} parent=39 // pred_region
          %297 = dma.done [#allocation6], 384
        $region52: #{tpu_custom_call.1} parent=39 // pred_fallthru
          _
        %s298 = sand.u32 %s47, 1
        %s299 = scalar_lea.sflag [#allocation3], %s298
        %s300 = sand.u32 %s47, 1
        %s301 = smul.addr %s300, 8
        %s302 = scalar_lea.vmem [#allocation2], %s301
        %p303 = pneg %p60
        %p304 = pneg %p57
        %s305 = sand.u32 %s25, 1
        %s306 = scalar_lea.sflag [#allocation6], %s305
        %s307 = sand.u32 %s75, 1
        %s308 = smul.addr %s307, 8
        %s309 = scalar_lea.vmem [#allocation5], %s308
        %p310 = pneg %p88
        %p311 = pneg %p85
        %p312 = scmp.lt.s32.totalorder %s29, 1
        %s313 = scalar_select %p312, %s29, 1
        %p314 = scmp.lt.s32.totalorder %s30, 0
        %s315 = scalar_select %p314, %s30, 0
        %s316 = sadd.s32 %s315, %s313
        %s317 = smul.addr %s316, 8
        %s318 = scalar_lea.vmem %s2, %s317
        %p319 = pneg %p116
        %p320 = pneg %p113
        %p321 = pneg %p137
        %p322 = pneg %p134
        %p323 = pneg %p158
        %p324 = pneg %p155
        %p325 = pneg %p186
        %p326 = pneg %p183
        %s327 = sand.u32 %s173, 1
        %s328 = scalar_lea.sflag [#allocation4], %s327
        %s329 = sand.u32 %s173, 1
        %s330 = smul.addr %s329, 8
        %s331 = scalar_lea.vmem [#allocation8], %s330
        %p332 = scmp.lt.s32.totalorder %s29, 1
        %s333 = scalar_select %p332, %s29, 1
        %p334 = scmp.lt.s32.totalorder %s30, 0
        %s335 = scalar_select %p334, %s30, 0
        %s336 = sadd.s32 %s335, %s333
        %s337 = smul.addr %s336, 8
        %s338 = scalar_lea.vmem %s2, %s337
        %v339 = vld [vmem:[#allocation7] sm:$0xff]
        %v340 = vld [vmem:[%s280] sm:$0xff]
        %s341 = scalar_lea.vmem [#allocation7], 8
        %v342 = vld [vmem:[%s341] sm:$0xff]
        %v343 = vld [vmem:[%s289] sm:$0xff]
        %vm344 = vcmask 64512
        %v346 = vsel %vm344, %v342, 0
        %348 = vmatprep.subr.mxu0 0.0
        %349 = vmatpush1.msra.mxu0 %v343
        %350 = vmatprep.subr.mxu0 0.0
        %351 = vmatpush1.msra.mxu0 0.0
        %352 = vmatprep.subr.mxu0 0.0
        %353 = vmatpush1.msra.mxu0 0.0
        %354 = vmatprep.subr.mxu0 0.0
        %355 = vmatpush1.msra.mxu0 0.0
        %356 = vmatprep.subr.mxu0 0.0
        %357 = vmatpush1.msra.mxu0 0.0
        %358 = vmatprep.subr.mxu0 0.0
        %359 = vmatpush1.msra.mxu0 0.0
        %360 = vmatprep.subr.mxu0 0.0
        %361 = vmatpush1.msra.mxu0 0.0
        %362 = vmatprep.subr.mxu0 0.0
        %363 = vmatpush1.msra.mxu0 0.0
        %364 = vmatprep.subr.mxu0 0.0
        %365 = vmatpush1.msra.mxu0 0.0
        %366 = vmatprep.subr.mxu0 0.0
        %367 = vmatpush1.msra.mxu0 0.0
        %368 = vmatprep.subr.mxu0 0.0
        %369 = vmatpush1.msra.mxu0 0.0
        %370 = vmatprep.subr.mxu0 0.0
        %371 = vmatpush1.msra.mxu0 0.0
        %372 = vmatprep.subr.mxu0 0.0
        %373 = vmatpush1.msra.mxu0 0.0
        %374 = vmatprep.subr.mxu0 0.0
        %375 = vmatpush1.msra.mxu0 0.0
        %376 = vmatprep.subr.mxu0 0.0
        %377 = vmatpush1.msra.mxu0 0.0
        %378 = vmatprep.subr.mxu0 0.0
        %379 = vmatpush1.msra.mxu0 0.0
        %380 = vmatprep.subr.mxu0 0.0
        %381 = vmatpush1.msra.mxu0 0.0
        %382 = vmatprep.subr.mxu0 0.0
        %383 = vmatpush1.msra.mxu0 0.0
        %384 = vmatprep.subr.mxu0 0.0
        %385 = vmatpush1.msra.mxu0 0.0
        %386 = vmatprep.subr.mxu0 0.0
        %387 = vmatpush1.msra.mxu0 0.0
        %388 = vmatprep.subr.mxu0 0.0
        %389 = vmatpush1.msra.mxu0 0.0
        %390 = vmatprep.subr.mxu0 0.0
        %391 = vmatpush1.msra.mxu0 0.0
        %392 = vmatprep.subr.mxu0 0.0
        %393 = vmatpush1.msra.mxu0 0.0
        %394 = vmatprep.subr.mxu0 0.0
        %395 = vmatpush1.msra.mxu0 0.0
        %396 = vmatprep.subr.mxu0 0.0
        %397 = vmatpush1.msra.mxu0 0.0
        %398 = vmatprep.subr.mxu0 0.0
        %399 = vmatpush1.msra.mxu0 0.0
        %400 = vmatprep.subr.mxu0 0.0
        %401 = vmatpush1.msra.mxu0 0.0
        %402 = vmatprep.subr.mxu0 0.0
        %403 = vmatpush1.msra.mxu0 0.0
        %404 = vmatprep.subr.mxu0 0.0
        %405 = vmatpush1.msra.mxu0 0.0
        %406 = vmatprep.subr.mxu0 0.0
        %407 = vmatpush1.msra.mxu0 0.0
        %408 = vmatprep.subr.mxu0 0.0
        %409 = vmatpush1.msra.mxu0 0.0
        %410 = vmatprep.subr.mxu0 0.0
        %411 = vmatpush1.msra.mxu0 0.0
        %412 = vmatprep.mubr.f32.mxu0 0.0
        %413 = vmatmul.mubr.f32.gmra.mrb[0].mxu0 %v346
        %v414 = vpop.f32.mrb[0].mxu0
        %v415 = vadd.f32 0.0, %v414
        %v416 = vpop.f32.mrb[0].mxu0
        %417 = vdwg.mxu0
        %v419 = vsel %vm344, %v339, 0
        %421 = vmatprep.subr.mxu0 0.0
        %422 = vmatpush1.msra.mxu0 %v340
        %423 = vmatprep.subr.mxu0 0.0
        %424 = vmatpush1.msra.mxu0 0.0
        %425 = vmatprep.subr.mxu0 0.0
        %426 = vmatpush1.msra.mxu0 0.0
        %427 = vmatprep.subr.mxu0 0.0
        %428 = vmatpush1.msra.mxu0 0.0
        %429 = vmatprep.subr.mxu0 0.0
        %430 = vmatpush1.msra.mxu0 0.0
        %431 = vmatprep.subr.mxu0 0.0
        %432 = vmatpush1.msra.mxu0 0.0
        %433 = vmatprep.subr.mxu0 0.0
        %434 = vmatpush1.msra.mxu0 0.0
        %435 = vmatprep.subr.mxu0 0.0
        %436 = vmatpush1.msra.mxu0 0.0
        %437 = vmatprep.subr.mxu0 0.0
        %438 = vmatpush1.msra.mxu0 0.0
        %439 = vmatprep.subr.mxu0 0.0
        %440 = vmatpush1.msra.mxu0 0.0
        %441 = vmatprep.subr.mxu0 0.0
        %442 = vmatpush1.msra.mxu0 0.0
        %443 = vmatprep.subr.mxu0 0.0
        %444 = vmatpush1.msra.mxu0 0.0
        %445 = vmatprep.subr.mxu0 0.0
        %446 = vmatpush1.msra.mxu0 0.0
        %447 = vmatprep.subr.mxu0 0.0
        %448 = vmatpush1.msra.mxu0 0.0
        %449 = vmatprep.subr.mxu0 0.0
        %450 = vmatpush1.msra.mxu0 0.0
        %451 = vmatprep.subr.mxu0 0.0
        %452 = vmatpush1.msra.mxu0 0.0
        %453 = vmatprep.subr.mxu0 0.0
        %454 = vmatpush1.msra.mxu0 0.0
        %455 = vmatprep.subr.mxu0 0.0
        %456 = vmatpush1.msra.mxu0 0.0
        %457 = vmatprep.subr.mxu0 0.0
        %458 = vmatpush1.msra.mxu0 0.0
        %459 = vmatprep.subr.mxu0 0.0
        %460 = vmatpush1.msra.mxu0 0.0
        %461 = vmatprep.subr.mxu0 0.0
        %462 = vmatpush1.msra.mxu0 0.0
        %463 = vmatprep.subr.mxu0 0.0
        %464 = vmatpush1.msra.mxu0 0.0
        %465 = vmatprep.subr.mxu0 0.0
        %466 = vmatpush1.msra.mxu0 0.0
        %467 = vmatprep.subr.mxu0 0.0
        %468 = vmatpush1.msra.mxu0 0.0
        %469 = vmatprep.subr.mxu0 0.0
        %470 = vmatpush1.msra.mxu0 0.0
        %471 = vmatprep.subr.mxu0 0.0
        %472 = vmatpush1.msra.mxu0 0.0
        %473 = vmatprep.subr.mxu0 0.0
        %474 = vmatpush1.msra.mxu0 0.0
        %475 = vmatprep.subr.mxu0 0.0
        %476 = vmatpush1.msra.mxu0 0.0
        %477 = vmatprep.subr.mxu0 0.0
        %478 = vmatpush1.msra.mxu0 0.0
        %479 = vmatprep.subr.mxu0 0.0
        %480 = vmatpush1.msra.mxu0 0.0
        %481 = vmatprep.subr.mxu0 0.0
        %482 = vmatpush1.msra.mxu0 0.0
        %483 = vmatprep.subr.mxu0 0.0
        %484 = vmatpush1.msra.mxu0 0.0
        %485 = vmatprep.mubr.f32.mxu0 0.0
        %486 = vmatmul.mubr.f32.gmra.mrb[0].mxu0 %v419
        %v487 = vpop.f32.mrb[0].mxu0
        %v488 = vadd.f32 %v415, %v487
        %v489 = vpop.f32.mrb[0].mxu0
        %490 = vdwg.mxu0
        %s491 = scalar_lea.vmem [#allocation7], 16
        %v492 = vld [vmem:[%s491] sm:$0xff]
        %v493 = vld [vmem:[%s338] sm:$0xff]
        %v495 = vsel %vm344, %v492, 0
        %497 = vmatprep.subr.mxu0 0.0
        %498 = vmatpush1.msra.mxu0 %v493
        %499 = vmatprep.subr.mxu0 0.0
        %500 = vmatpush1.msra.mxu0 0.0
        %501 = vmatprep.subr.mxu0 0.0
        %502 = vmatpush1.msra.mxu0 0.0
        %503 = vmatprep.subr.mxu0 0.0
        %504 = vmatpush1.msra.mxu0 0.0
        %505 = vmatprep.subr.mxu0 0.0
        %506 = vmatpush1.msra.mxu0 0.0
        %507 = vmatprep.subr.mxu0 0.0
        %508 = vmatpush1.msra.mxu0 0.0
        %509 = vmatprep.subr.mxu0 0.0
        %510 = vmatpush1.msra.mxu0 0.0
        %511 = vmatprep.subr.mxu0 0.0
        %512 = vmatpush1.msra.mxu0 0.0
        %513 = vmatprep.subr.mxu0 0.0
        %514 = vmatpush1.msra.mxu0 0.0
        %515 = vmatprep.subr.mxu0 0.0
        %516 = vmatpush1.msra.mxu0 0.0
        %517 = vmatprep.subr.mxu0 0.0
        %518 = vmatpush1.msra.mxu0 0.0
        %519 = vmatprep.subr.mxu0 0.0
        %520 = vmatpush1.msra.mxu0 0.0
        %521 = vmatprep.subr.mxu0 0.0
        %522 = vmatpush1.msra.mxu0 0.0
        %523 = vmatprep.subr.mxu0 0.0
        %524 = vmatpush1.msra.mxu0 0.0
        %525 = vmatprep.subr.mxu0 0.0
        %526 = vmatpush1.msra.mxu0 0.0
        %527 = vmatprep.subr.mxu0 0.0
        %528 = vmatpush1.msra.mxu0 0.0
        %529 = vmatprep.subr.mxu0 0.0
        %530 = vmatpush1.msra.mxu0 0.0
        %531 = vmatprep.subr.mxu0 0.0
        %532 = vmatpush1.msra.mxu0 0.0
        %533 = vmatprep.subr.mxu0 0.0
        %534 = vmatpush1.msra.mxu0 0.0
        %535 = vmatprep.subr.mxu0 0.0
        %536 = vmatpush1.msra.mxu0 0.0
        %537 = vmatprep.subr.mxu0 0.0
        %538 = vmatpush1.msra.mxu0 0.0
        %539 = vmatprep.subr.mxu0 0.0
        %540 = vmatpush1.msra.mxu0 0.0
        %541 = vmatprep.subr.mxu0 0.0
        %542 = vmatpush1.msra.mxu0 0.0
        %543 = vmatprep.subr.mxu0 0.0
        %544 = vmatpush1.msra.mxu0 0.0
        %545 = vmatprep.subr.mxu0 0.0
        %546 = vmatpush1.msra.mxu0 0.0
        %547 = vmatprep.subr.mxu0 0.0
        %548 = vmatpush1.msra.mxu0 0.0
        %549 = vmatprep.subr.mxu0 0.0
        %550 = vmatpush1.msra.mxu0 0.0
        %551 = vmatprep.subr.mxu0 0.0
        %552 = vmatpush1.msra.mxu0 0.0
        %553 = vmatprep.subr.mxu0 0.0
        %554 = vmatpush1.msra.mxu0 0.0
        %555 = vmatprep.subr.mxu0 0.0
        %556 = vmatpush1.msra.mxu0 0.0
        %557 = vmatprep.subr.mxu0 0.0
        %558 = vmatpush1.msra.mxu0 0.0
        %559 = vmatprep.subr.mxu0 0.0
        %560 = vmatpush1.msra.mxu0 0.0
        %561 = vmatprep.mubr.f32.mxu0 0.0
        %562 = vmatmul.mubr.f32.gmra.mrb[0].mxu0 %v495
        %v563 = vpop.f32.mrb[0].mxu0
        %v564 = vadd.f32 0.0, %v563
        %v565 = vpop.f32.mrb[0].mxu0
        %566 = vdwg.mxu0
        %v567 = vadd.f32 %v488, %v564
        %v568 = vld [vmem:[%s4] sm:$0xff]
        %570 = vset.pattern.permute.xlu0 0
        %571 = vperm.xlu0 %570, %v568
        %v572 = vpop.permute.xlu0 %571
        %v574 = vadd.f32 %v567, %v572
        %575 = vst.msk [vmem:[%s331] sm:$0xff] %vm344, %v574
        %s576 = sand.u32 %s173, 1
        %s577 = scalar_lea.sflag [#allocation4], %s576
        %s578 = sand.u32 %s173, 1
        %s579 = smul.addr %s578, 8
        %s580 = scalar_lea.vmem [#allocation8], %s579
        // Predicated region
        $region53: #{tpu_custom_call.1} parent=39 // pred_check
          %p581 = pneg %p183
        $region54: #{tpu_custom_call.1} parent=39 // pred_check_branch
          %583 = sbr.rel (%p581) target = $region56
        $region55: #{tpu_custom_call.1} parent=39 // pred_region
          %s585 = ssub.s32 128, 128
          %586 = vsyncadd %s577, %s585
          %s587 = sadd.s32 %s30, %s29
          %s588 = smul.addr %s587, 128
          %s589 = scalar_lea.hbm %s5, %s588
          %s591 = sshll.u32 %s580, 4
          %s592 = int_to_ptr.vmem [resolvable:$true] %s591
          %594 = dma.vmem_to_hbm [thread:$0]  %s592, 128, %s589, %s577
        $region56: #{tpu_custom_call.1} parent=39 // pred_fallthru
          _
      $region40: #{tpu_custom_call.1} parent=5 // pred_fallthru
        _
      %p595 = scmp.le.s32.totalorder 2, %s20
      // Predicated region
      $region57: #{tpu_custom_call.1} parent=5 // pred_check
        %p596 = pneg %p595
      $region58: #{tpu_custom_call.1} parent=5 // pred_check_branch
        %598 = sbr.rel (%p596) target = $region60
      $region59: #{tpu_custom_call.1} parent=5 // pred_region
        %s599 = ssub.s32 %s20, 2
        // Predicated region
        $region61: #{tpu_custom_call.1} parent=59 // pred_check
          %p600 = pneg %p189
        $region62: #{tpu_custom_call.1} parent=59 // pred_check_branch
          %602 = sbr.rel (%p600) target = $region64
        $region63: #{tpu_custom_call.1} parent=59 // pred_region
          %s603 = sand.u32 %s174, 1
          %s604 = scalar_lea.sflag [#allocation4], %s603
          %s605 = sand.u32 %s174, 1
          %s606 = smul.addr %s605, 8
          %s607 = scalar_lea.vmem [#allocation8], %s606
          %608 = dma.done %s604, 128
        $region64: #{tpu_custom_call.1} parent=59 // pred_fallthru
          _
      $region60: #{tpu_custom_call.1} parent=5 // pred_fallthru
        _
    $region6: #{tpu_custom_call.1} parent=1 // loop_footer
      %s24 = sadd.s32 1, %s20
    $region7: #{tpu_custom_call.1} parent=1 // loop_footer_branch
      %19 = sbr.rel target = $region3
    $region8: #{tpu_custom_call.1} parent=1 // loop_exit
      _
    %609 = vsyncpa [#allocation3], 1
    %s610 = scalar_lea.sflag [#allocation3], 1
    %611 = vsyncpa %s610, 1
    %612 = vsyncpa [#allocation6], 1
    %s613 = scalar_lea.sflag [#allocation6], 1
    %614 = vsyncpa %s613, 1
    %615 = vsyncpa [#allocation4], 1
    %s616 = scalar_lea.sflag [#allocation4], 1
    %617 = vsyncpa %s616, 1

</llo_original>
